<compile_context>
chip_gen: v5e
topology: v5e:2x2
jax: 0.10.0
libtpu: 0.0.40
codegen_flags: <defaults>
</compile_context>

<pallas_src>
import functools
import math

import jax
import jax.numpy as jnp
from jax.experimental import pallas as pl
from jax.experimental.pallas import tpu as pltpu


# ----------------------------- helpers ---------------------------------------
def _gelu(x):
    # TODO(synk): nn.GELU() default is the exact erf formulation; we use the tanh
    # approximation since tanh is guaranteed to lower on the TPU EUP.
    c = math.sqrt(2.0 / math.pi)
    return 0.5 * x * (1.0 + jnp.tanh(c * (x + 0.044715 * (x * x * x))))


def _uniform_bits(shape, row0, col0, seed):
    """Deterministic per-element uint32 hash of global (row, col) coords + seed."""
    r = (jax.lax.broadcasted_iota(jnp.int32, shape, 0) + row0).astype(jnp.uint32)
    c = (jax.lax.broadcasted_iota(jnp.int32, shape, 1) + col0).astype(jnp.uint32)
    x = (r * jnp.uint32(0x9E3779B1)) ^ (c * jnp.uint32(0x85EBCA77))
    x = x ^ jnp.uint32(seed & 0xFFFFFFFF)
    # murmur3 fmix32 finalizer
    x = x ^ (x >> 16)
    x = x * jnp.uint32(0x85EBCA6B)
    x = x ^ (x >> 13)
    x = x * jnp.uint32(0xC2B2AE35)
    x = x ^ (x >> 16)
    return x


def _pick_block(dim, target, unit):
    """Largest multiple of `unit` that divides `dim` and is <= target (else full dim)."""
    b = min(target, dim)
    b = (b // unit) * unit
    while b >= unit:
        if dim % b == 0:
            return b
        b -= unit
    return dim  # small / ragged dim: use the full extent (allowed by Mosaic)


# --------------------- fused matmul (+ bias / GELU / dropout) ----------------
def _linear_kernel(x_ref, w_ref, b_ref, o_ref, acc_ref, *,
                   gelu_dropout, p, seed, tm, tn):
    # All grid-position reads happen at the kernel top level (NOT inside pl.when
    # bodies) so the interpret/CPU fallback can substitute them correctly; the
    # epilogue closure only captures the derived int32 scalars.
    k = pl.program_id(2)
    last_k = pl.num_programs(2) - 1
    row0 = pl.program_id(0) * tm
    col0 = pl.program_id(1) * tn

    @pl.when(k == 0)
    def _():
        acc_ref[...] = jnp.zeros_like(acc_ref)

    acc_ref[...] += jnp.dot(x_ref[...], w_ref[...],
                            preferred_element_type=jnp.float32)

    @pl.when(k == last_k)
    def _():
        h = acc_ref[...] + b_ref[...].astype(jnp.float32)
        if gelu_dropout:
            h = _gelu(h)
            if p >= 1.0:
                h = jnp.zeros_like(h)
            elif p > 0.0:
                bits = _uniform_bits((tm, tn), row0, col0, seed)
                thresh = jnp.uint32(min(int(p * (2 ** 32)), 2 ** 32 - 1))
                keep = bits >= thresh                              # P(keep) = 1 - p
                h = jnp.where(keep, h * (1.0 / (1.0 - p)), 0.0)    # inverted dropout
        o_ref[...] = h.astype(o_ref.dtype)


def fused_linear(x2d, w, b, *, gelu_dropout=False, p=0.0, seed=0,
                 tm=512, tn=256, tk=512):
    """out = epilogue(x2d @ w + b); epilogue = GELU+dropout or identity."""
    R, K = x2d.shape
    Kw, N = w.shape
    assert K == Kw
    tm = _pick_block(R, tm, 8)      # sublane axis: multiple of 8 (or full dim)
    tn = _pick_block(N, tn, 128)    # lane axis: multiple of 128 (or full dim)
    tk = _pick_block(K, tk, 128)
    grid = (R // tm, N // tn, K // tk)

    kernel = functools.partial(_linear_kernel, gelu_dropout=bool(gelu_dropout),
                               p=float(p), seed=int(seed), tm=tm, tn=tn)
    return pl.pallas_call(
        kernel,
        out_shape=jax.ShapeDtypeStruct((R, N), x2d.dtype),
        grid=grid,
        in_specs=[
            pl.BlockSpec((tm, tk), lambda i, j, k: (i, k)),
            pl.BlockSpec((tk, tn), lambda i, j, k: (k, j)),
            pl.BlockSpec((1, tn), lambda i, j, k: (0, j)),
        ],
        out_specs=pl.BlockSpec((tm, tn), lambda i, j, k: (i, j)),
        scratch_shapes=[pltpu.VMEM((tm, tn), jnp.float32)],
        compiler_params=pltpu.CompilerParams(
            dimension_semantics=("parallel", "parallel", "arbitrary"),
            # Tiles above use only a few MiB double-buffered: safe on v5e/v6e/v7x.
            vmem_limit_bytes=32 * 1024 * 1024,
        ),
    )(x2d, w, b.reshape(1, N))


# ------------------------------ module ----------------------------------------
class FeedForward:
    """JAX/Pallas port of the PyTorch FeedForward module (forward pass)."""

    def __init__(self, d_model, dff, dropout=0.1, *, key=None, dtype=jnp.float32):
        if key is None:
            key = jax.random.PRNGKey(0)
        k1, k2, k3, k4 = jax.random.split(key, 4)
        # nn.Linear default init: U(-1/sqrt(fan_in), 1/sqrt(fan_in)) for W and b.
        bound1 = 1.0 / math.sqrt(d_model)
        bound2 = 1.0 / math.sqrt(dff)
        self.w1 = jax.random.uniform(k1, (d_model, dff), dtype, -bound1, bound1)
        self.b1 = jax.random.uniform(k2, (dff,), dtype, -bound1, bound1)
        self.w2 = jax.random.uniform(k3, (dff, d_model), dtype, -bound2, bound2)
        self.b2 = jax.random.uniform(k4, (d_model,), dtype, -bound2, bound2)
        self.p = float(dropout)
        self.d_model = d_model
        self.dff = dff

    def __call__(self, x, *, train=True, dropout_seed=0):
        B, S, D = x.shape
        assert D == self.d_model
        x2d = x.reshape(B * S, D)
        p = self.p if train else 0.0
        h = fused_linear(x2d, self.w1, self.b1,
                         gelu_dropout=True, p=p, seed=dropout_seed)
        y2d = fused_linear(h, self.w2, self.b2)
        return y2d.reshape(B, S, D)


# ------------------------------ demo ------------------------------------------
if __name__ == "__main__":
    key = jax.random.PRNGKey(0)
    B, S, D, F = 2, 8, 128, 256      # d_model multiple of 128 -> lane-dense stores
    kx, kp = jax.random.split(key)
    x = jax.random.normal(kx, (B, S, D), jnp.float32)

    ff = FeedForward(D, F, dropout=0.1, key=kp)

    out_train = ff(x, train=True, dropout_seed=42)   # dropout active
    out_eval = ff(x, train=False)                    # dropout is identity
    jax.block_until_ready((out_train, out_eval))

    # Pure-JAX reference (eval mode).
    x2d = x.reshape(B * S, D)
    h_ref = _gelu(jnp.dot(x2d, ff.w1, preferred_element_type=jnp.float32) + ff.b1)
    y_ref = (jnp.dot(h_ref, ff.w2, preferred_element_type=jnp.float32)
             + ff.b2).reshape(B, S, D)

    assert out_train.shape == (B, S, D)
    assert bool(jnp.all(jnp.isfinite(out_train)))
    assert jnp.allclose(out_eval, y_ref, atol=1e-3, rtol=1e-3), (
        float(jnp.max(jnp.abs(out_eval - y_ref))))
    print("KERNEL_OK")
</pallas_src>

<mosaic_0001>
module attributes {stable_mosaic.version = 11 : i64} {
  func.func @_linear_kernel(%arg0: i32, %arg1: i32, %arg2: i32, %arg3: memref<16x128xf32, #tpu.memory_space<vmem>>, %arg4: memref<128x256xf32, #tpu.memory_space<vmem>>, %arg5: memref<1x256xf32, #tpu.memory_space<vmem>>, %arg6: memref<16x256xf32, #tpu.memory_space<vmem>>, %arg7: memref<16x256xf32, #tpu.memory_space<vmem>>) attributes {dimension_semantics = [#tpu.dimension_semantics<parallel>, #tpu.dimension_semantics<parallel>, #tpu.dimension_semantics<arbitrary>], iteration_bounds = array<i64: 1, 1, 1>, scalar_prefetch = 0 : i64, scratch_operands = 1 : i64, tpu.core_type = #tpu.core_type<tc>, window_params = [{transform_indices = @transform_0, window_bounds = array<i64: 16, 128>}, {transform_indices = @transform_1, window_bounds = array<i64: 128, 256>}, {transform_indices = @transform_2, window_bounds = array<i64: 1, 256>}, {transform_indices = @transform_3, window_bounds = array<i64: 16, 256>}]} {
    %c16_i32 = arith.constant 16 : i32
    %0 = arith.muli %arg0, %c16_i32 : i32
    %c256_i32 = arith.constant 256 : i32
    %1 = arith.muli %arg1, %c256_i32 : i32
    %c0_i32 = arith.constant 0 : i32
    %2 = arith.cmpi eq, %arg2, %c0_i32 : i32
    %3 = arith.extui %2 : i1 to i32
    %c0_i32_0 = arith.constant 0 : i32
    %4 = arith.cmpi ne, %3, %c0_i32_0 : i32
    scf.if %4 {
      %cst_10 = arith.constant 0.000000e+00 : f32
      %14 = vector.broadcast %cst_10 : f32 to vector<16x256xf32>
      %c0_11 = arith.constant 0 : index
      %c0_12 = arith.constant 0 : index
      %15 = vector.load %arg7[%c0_11, %c0_12] : memref<16x256xf32, #tpu.memory_space<vmem>>, vector<16x256xf32>
      tpu.vector_store %arg7[%c0_11, %c0_12], %14 {strides = array<i32>} : memref<16x256xf32, #tpu.memory_space<vmem>>, vector<16x256xf32>,
    } else {
    }
    %c0 = arith.constant 0 : index
    %c0_1 = arith.constant 0 : index
    %5 = vector.load %arg7[%c0, %c0_1] : memref<16x256xf32, #tpu.memory_space<vmem>>, vector<16x256xf32>
    %c0_2 = arith.constant 0 : index
    %c0_3 = arith.constant 0 : index
    %6 = vector.load %arg3[%c0_2, %c0_3] : memref<16x128xf32, #tpu.memory_space<vmem>>, vector<16x128xf32>
    %c0_4 = arith.constant 0 : index
    %c0_5 = arith.constant 0 : index
    %7 = vector.load %arg4[%c0_4, %c0_5] : memref<128x256xf32, #tpu.memory_space<vmem>>, vector<128x256xf32>
    %cst = arith.constant dense<0.000000e+00> : vector<16x256xf32>
    %8 = tpu.matmul %6, %7, %cst {dimension_numbers = #tpu.dot_dimension_numbers<[1], [0], [0], [1], [0, 0, 1, 1], [], []>} : vector<16x128xf32>, vector<128x256xf32>, vector<16x256xf32> -> vector<16x256xf32>
    %9 = arith.addf %5, %8 : vector<16x256xf32>
    %c0_6 = arith.constant 0 : index
    %c0_7 = arith.constant 0 : index
    %10 = vector.load %arg7[%c0_6, %c0_7] : memref<16x256xf32, #tpu.memory_space<vmem>>, vector<16x256xf32>
    tpu.vector_store %arg7[%c0_6, %c0_7], %9 {strides = array<i32>} : memref<16x256xf32, #tpu.memory_space<vmem>>, vector<16x256xf32>,
    %c0_i32_8 = arith.constant 0 : i32
    %11 = arith.cmpi eq, %arg2, %c0_i32_8 : i32
    %12 = arith.extui %11 : i1 to i32
    %c0_i32_9 = arith.constant 0 : i32
    %13 = arith.cmpi ne, %12, %c0_i32_9 : i32
    scf.if %13 {
      %c0_10 = arith.constant 0 : index
      %c0_11 = arith.constant 0 : index
      %14 = vector.load %arg7[%c0_10, %c0_11] : memref<16x256xf32, #tpu.memory_space<vmem>>, vector<16x256xf32>
      %c0_12 = arith.constant 0 : index
      %c0_13 = arith.constant 0 : index
      %15 = vector.load %arg5[%c0_12, %c0_13] : memref<1x256xf32, #tpu.memory_space<vmem>>, vector<1x256xf32>
      %16 = vector.broadcast %15 : vector<1x256xf32> to vector<16x256xf32>
      %17 = arith.addf %14, %16 : vector<16x256xf32>
      %cst_14 = arith.constant 5.000000e-01 : f32
      %18 = vector.broadcast %cst_14 : f32 to vector<16x256xf32>
      %19 = arith.mulf %18, %17 : vector<16x256xf32>
      %20 = arith.mulf %17, %17 : vector<16x256xf32>
      %21 = arith.mulf %20, %17 : vector<16x256xf32>
      %cst_15 = arith.constant 4.471500e-02 : f32
      %22 = vector.broadcast %cst_15 : f32 to vector<16x256xf32>
      %23 = arith.mulf %22, %21 : vector<16x256xf32>
      %24 = arith.addf %17, %23 : vector<16x256xf32>
      %cst_16 = arith.constant 0.797884583 : f32
      %25 = vector.broadcast %cst_16 : f32 to vector<16x256xf32>
      %26 = arith.mulf %25, %24 : vector<16x256xf32>
      %27 = math.tanh %26 : vector<16x256xf32>
      %cst_17 = arith.constant 1.000000e+00 : f32
      %28 = vector.broadcast %cst_17 : f32 to vector<16x256xf32>
      %29 = arith.addf %28, %27 : vector<16x256xf32>
      %30 = arith.mulf %19, %29 : vector<16x256xf32>
      %31 = tpu.iota {dimensions = array<i32: 0>} : vector<16x256xi32>
      %32 = vector.broadcast %0 : i32 to vector<16x256xi32>
      %33 = arith.addi %31, %32 : vector<16x256xi32>
      %34 = tpu.iota {dimensions = array<i32: 1>} : vector<16x256xi32>
      %35 = vector.broadcast %1 : i32 to vector<16x256xi32>
      %36 = arith.addi %34, %35 : vector<16x256xi32>
      %c-1640531535_i32 = arith.constant -1640531535 : i32
      %37 = vector.broadcast %c-1640531535_i32 : i32 to vector<16x256xi32>
      %38 = arith.muli %33, %37 : vector<16x256xi32>
      %c-2048144777_i32 = arith.constant -2048144777 : i32
      %39 = vector.broadcast %c-2048144777_i32 : i32 to vector<16x256xi32>
      %40 = arith.muli %36, %39 : vector<16x256xi32>
      %41 = arith.xori %38, %40 : vector<16x256xi32>
      %c42_i32 = arith.constant 42 : i32
      %42 = vector.broadcast %c42_i32 : i32 to vector<16x256xi32>
      %43 = arith.xori %41, %42 : vector<16x256xi32>
      %c16_i32_18 = arith.constant 16 : i32
      %44 = vector.broadcast %c16_i32_18 : i32 to vector<16x256xi32>
      %45 = arith.shrui %43, %44 : vector<16x256xi32>
      %46 = arith.xori %43, %45 : vector<16x256xi32>
      %c-2048144789_i32 = arith.constant -2048144789 : i32
      %47 = vector.broadcast %c-2048144789_i32 : i32 to vector<16x256xi32>
      %48 = arith.muli %46, %47 : vector<16x256xi32>
      %c13_i32 = arith.constant 13 : i32
      %49 = vector.broadcast %c13_i32 : i32 to vector<16x256xi32>
      %50 = arith.shrui %48, %49 : vector<16x256xi32>
      %51 = arith.xori %48, %50 : vector<16x256xi32>
      %c-1028477387_i32 = arith.constant -1028477387 : i32
      %52 = vector.broadcast %c-1028477387_i32 : i32 to vector<16x256xi32>
      %53 = arith.muli %51, %52 : vector<16x256xi32>
      %c16_i32_19 = arith.constant 16 : i32
      %54 = vector.broadcast %c16_i32_19 : i32 to vector<16x256xi32>
      %55 = arith.shrui %53, %54 : vector<16x256xi32>
      %56 = arith.xori %53, %55 : vector<16x256xi32>
      %c429496729_i32 = arith.constant 429496729 : i32
      %57 = vector.broadcast %c429496729_i32 : i32 to vector<16x256xi32>
      %58 = arith.cmpi uge, %56, %57 : vector<16x256xi32>
      %cst_20 = arith.constant 1.11111116 : f32
      %59 = vector.broadcast %cst_20 : f32 to vector<16x256xf32>
      %60 = arith.mulf %30, %59 : vector<16x256xf32>
      %cst_21 = arith.constant 0.000000e+00 : f32
      %61 = vector.broadcast %cst_21 : f32 to vector<16x256xf32>
      %62 = arith.select %58, %60, %61 : vector<16x256xi1>, vector<16x256xf32>
      %c0_22 = arith.constant 0 : index
      %c0_23 = arith.constant 0 : index
      %63 = vector.load %arg6[%c0_22, %c0_23] : memref<16x256xf32, #tpu.memory_space<vmem>>, vector<16x256xf32>
      tpu.vector_store %arg6[%c0_22, %c0_23], %62 {strides = array<i32>} : memref<16x256xf32, #tpu.memory_space<vmem>>, vector<16x256xf32>,
    } else {
    }
    return
  }
  func.func @transform_0(%arg0: i32, %arg1: i32, %arg2: i32) -> (i32, i32) {
    %c0_i32 = arith.constant 0 : i32
    return %arg0, %arg2 : i32, i32
  }
  func.func @transform_1(%arg0: i32, %arg1: i32, %arg2: i32) -> (i32, i32) {
    %c0_i32 = arith.constant 0 : i32
    return %arg2, %arg1 : i32, i32
  }
  func.func @transform_2(%arg0: i32, %arg1: i32, %arg2: i32) -> (i32, i32) {
    %c0_i32 = arith.constant 0 : i32
    %c0_i32_0 = arith.constant 0 : i32
    return %c0_i32, %arg1 : i32, i32
  }
  func.func @transform_3(%arg0: i32, %arg1: i32, %arg2: i32) -> (i32, i32) {
    %c0_i32 = arith.constant 0 : i32
    return %arg0, %arg1 : i32, i32
  }
}

</mosaic_0001>

<llo_original>
// kernel: tpu_custom_call.1
$region0: #{tpu_custom_call.1}
  #allocation0 [shape = 'u32[]', space=smem, size = 0x4, offset = 0x4, fixed_abs, tag = 'smem constant byte address 0x4 - core index']
  #allocation1 [shape = 'u32[72,128]{1,0:T(1,128)}', space=vmem, size = 0x9000, scoped, tag = 'internal scratch']
  #allocation2 [shape = 'f32[16,256]{1,0:T(8,128)}', space=vmem, size = 0x4000, scoped, tag = 'scratch operand']
  %s0 = inlined_call_operand.hbm [shape: f32[16,128], index: 0, kind: input, shape index: {}]
  %s1 = inlined_call_operand.hbm [shape: f32[128,256], index: 1, kind: input, shape index: {}]
  %s2 = inlined_call_operand.hbm [shape: f32[1,256], index: 2, kind: input, shape index: {}]
  %s3 = inlined_call_operand.hbm [shape: f32[16,256], index: 3, kind: output, shape index: {}]
  %s4 = sld [smem:[#allocation0]]
  $region42: #{tpu_custom_call.1} parent=0
    _
  %s6 = ssub.s32 1, %s4
  %s7 = scalar_select 0, %s6, %s4
  $region1: #{tpu_custom_call.1} parent=0
    #allocation3 [shape = 'u8[8192]{0}', space=vmem, size = 0x2000, scoped, tag = 'input window, operand 0, single buffered']
    #allocation4 [shape = 's32[1]{0}', space=sflag, size = 0x4, scoped, tag = 'scoped memory for tpu_custom_call.1']
    #allocation5 [shape = 's32[1]{0}', space=sflag, size = 0x4, scoped, tag = 'scoped memory for tpu_custom_call.1']
    #allocation6 [shape = 'u8[131072]{0}', space=vmem, size = 0x20000, scoped, tag = 'input window, operand 1, single buffered']
    #allocation7 [shape = 's32[1]{0}', space=sflag, size = 0x4, scoped, tag = 'scoped memory for tpu_custom_call.1']
    #allocation8 [shape = 'u8[1024]{0}', space=vmem, size = 0x400, scoped, tag = 'input window, operand 2, single buffered']
    #allocation9 [shape = 'u8[16384]{0}', space=vmem, size = 0x4000, scoped, tag = 'output window, operand 0, single buffered']
    %8 = vsyncpa [#allocation4], 0
    %9 = vsyncpa [#allocation7], 0
    %10 = vsyncpa [#allocation5], 0
    // Predicated region
    $region2: #{tpu_custom_call.1} parent=1 // pred_check
      _
    $region3: #{tpu_custom_call.1} parent=1 // pred_check_branch
      %12 = sbr.rel (0) target = $region5
    $region4: #{tpu_custom_call.1} parent=1 // pred_region
      %14 = vsyncadd [#allocation4], 0
      %s15 = sshll.u32 %s0, 4
      %s16 = int_to_ptr.hbm [resolvable:$true] %s15
      %s17 = sshll.u32 [#allocation3], 4
      %s18 = int_to_ptr.vmem [resolvable:$true] %s17
      %23 = dma.hbm_to_vmem [thread:$0]  %s16, 256, %s18, [#allocation4], 128, 128, 8
    $region5: #{tpu_custom_call.1} parent=1 // pred_fallthru
      _
    // Predicated region
    $region6: #{tpu_custom_call.1} parent=1 // pred_check
      _
    $region7: #{tpu_custom_call.1} parent=1 // pred_check_branch
      %25 = sbr.rel (0) target = $region9
    $region8: #{tpu_custom_call.1} parent=1 // pred_region
      %27 = vsyncadd [#allocation7], 0
      %s28 = sshll.u32 %s1, 4
      %s29 = int_to_ptr.hbm [resolvable:$true] %s28
      %s30 = sshll.u32 [#allocation6], 4
      %s31 = int_to_ptr.vmem [resolvable:$true] %s30
      %36 = dma.hbm_to_vmem [thread:$0]  %s29, 4096, %s31, [#allocation7], 256, 256, 16
    $region9: #{tpu_custom_call.1} parent=1 // pred_fallthru
      _
    // Predicated region
    $region10: #{tpu_custom_call.1} parent=1 // pred_check
      _
    $region11: #{tpu_custom_call.1} parent=1 // pred_check_branch
      %38 = sbr.rel (0) target = $region13
    $region12: #{tpu_custom_call.1} parent=1 // pred_region
      %40 = vsyncadd [#allocation7], 0
      %s42 = sshll.u32 %s2, 4
      %s43 = int_to_ptr.hbm [resolvable:$true] %s42
      %s44 = sshll.u32 [#allocation8], 4
      %s45 = int_to_ptr.vmem [resolvable:$true] %s44
      %47 = dma.hbm_to_vmem [thread:$0]  %s43, 32, %s45, [#allocation7]
    $region13: #{tpu_custom_call.1} parent=1 // pred_fallthru
      _
    // Predicated region
    $region14: #{tpu_custom_call.1} parent=1 // pred_check
      _
    $region15: #{tpu_custom_call.1} parent=1 // pred_check_branch
      %49 = sbr.rel (0) target = $region17
    $region16: #{tpu_custom_call.1} parent=1 // pred_region
      %51 = dma.done [#allocation4], 256
    $region17: #{tpu_custom_call.1} parent=1 // pred_fallthru
      _
    // Predicated region
    $region18: #{tpu_custom_call.1} parent=1 // pred_check
      _
    $region19: #{tpu_custom_call.1} parent=1 // pred_check_branch
      %53 = sbr.rel (0) target = $region21
    $region20: #{tpu_custom_call.1} parent=1 // pred_region
      %55 = dma.done [#allocation7], 4096
    $region21: #{tpu_custom_call.1} parent=1 // pred_fallthru
      _
    // Predicated region
    $region22: #{tpu_custom_call.1} parent=1 // pred_check
      _
    $region23: #{tpu_custom_call.1} parent=1 // pred_check_branch
      %57 = sbr.rel (0) target = $region25
    $region24: #{tpu_custom_call.1} parent=1 // pred_region
      %59 = dma.done [#allocation7], 32
    $region25: #{tpu_custom_call.1} parent=1 // pred_fallthru
      _
    %s60 = smul.u32 0, 16
    %s61 = smul.u32 0, 256
    %p62 = scmp.eq.s32.totalorder 0, 0
    // Predicated region
    $region26: #{tpu_custom_call.1} parent=1 // pred_check
      %p63 = pneg %p62
    $region27: #{tpu_custom_call.1} parent=1 // pred_check_branch
      %65 = sbr.rel (%p63) target = $region29
    $region28: #{tpu_custom_call.1} parent=1 // pred_region
      %66 = vst [vmem:[#allocation2] sm:$0xff] 0.0
      %67 = vst [vmem:[#allocation2 + $0x8] sm:$0xff] 0.0
      %68 = vst [vmem:[#allocation2 + $0x10] sm:$0xff] 0.0
      %69 = vst [vmem:[#allocation2 + $0x18] sm:$0xff] 0.0
    $region29: #{tpu_custom_call.1} parent=1 // pred_fallthru
      _
    %v70 = vld [vmem:[#allocation2] sm:$0xff]
    %v71 = vld [vmem:[#allocation2 + $0x8] sm:$0xff]
    %v72 = vld [vmem:[#allocation2 + $0x10] sm:$0xff]
    %v73 = vld [vmem:[#allocation2 + $0x18] sm:$0xff]
    %v74 = vld [vmem:[#allocation3] sm:$0xff]
    %v75 = vld [vmem:[#allocation3 + $0x8] sm:$0xff]
    %v76 = vld [vmem:[#allocation6] sm:$0xff]
    %v77 = vld [vmem:[#allocation6 + $0x8] sm:$0xff]
    %v78 = vld [vmem:[#allocation6 + $0x10] sm:$0xff]
    %v79 = vld [vmem:[#allocation6 + $0x18] sm:$0xff]
    %v80 = vld [vmem:[#allocation6 + $0x20] sm:$0xff]
    %v81 = vld [vmem:[#allocation6 + $0x28] sm:$0xff]
    %v82 = vld [vmem:[#allocation6 + $0x30] sm:$0xff]
    %v83 = vld [vmem:[#allocation6 + $0x38] sm:$0xff]
    %v84 = vld [vmem:[#allocation6 + $0x40] sm:$0xff]
    %v85 = vld [vmem:[#allocation6 + $0x48] sm:$0xff]
    %v86 = vld [vmem:[#allocation6 + $0x50] sm:$0xff]
    %v87 = vld [vmem:[#allocation6 + $0x58] sm:$0xff]
    %v88 = vld [vmem:[#allocation6 + $0x60] sm:$0xff]
    %v89 = vld [vmem:[#allocation6 + $0x68] sm:$0xff]
    %v90 = vld [vmem:[#allocation6 + $0x70] sm:$0xff]
    %v91 = vld [vmem:[#allocation6 + $0x78] sm:$0xff]
    %v92 = vld [vmem:[#allocation6 + $0x80] sm:$0xff]
    %v93 = vld [vmem:[#allocation6 + $0x88] sm:$0xff]
    %v94 = vld [vmem:[#allocation6 + $0x90] sm:$0xff]
    %v95 = vld [vmem:[#allocation6 + $0x98] sm:$0xff]
    %v96 = vld [vmem:[#allocation6 + $0xa0] sm:$0xff]
    %v97 = vld [vmem:[#allocation6 + $0xa8] sm:$0xff]
    %v98 = vld [vmem:[#allocation6 + $0xb0] sm:$0xff]
    %v99 = vld [vmem:[#allocation6 + $0xb8] sm:$0xff]
    %v100 = vld [vmem:[#allocation6 + $0xc0] sm:$0xff]
    %v101 = vld [vmem:[#allocation6 + $0xc8] sm:$0xff]
    %v102 = vld [vmem:[#allocation6 + $0xd0] sm:$0xff]
    %v103 = vld [vmem:[#allocation6 + $0xd8] sm:$0xff]
    %v104 = vld [vmem:[#allocation6 + $0xe0] sm:$0xff]
    %v105 = vld [vmem:[#allocation6 + $0xe8] sm:$0xff]
    %v106 = vld [vmem:[#allocation6 + $0xf0] sm:$0xff]
    %v107 = vld [vmem:[#allocation6 + $0xf8] sm:$0xff]
    %108 = vmatpush.msra.mxu0 %v106
    %109 = vmatpush.msra.mxu0 %v104
    %110 = vmatpush.msra.mxu0 %v102
    %111 = vmatpush.msra.mxu0 %v100
    %112 = vmatpush.msra.mxu0 %v98
    %113 = vmatpush.msra.mxu0 %v96
    %114 = vmatpush.msra.mxu0 %v94
    %115 = vmatpush.msra.mxu0 %v92
    %116 = vmatpush.msra.mxu0 %v90
    %117 = vmatpush.msra.mxu0 %v88
    %118 = vmatpush.msra.mxu0 %v86
    %119 = vmatpush.msra.mxu0 %v84
    %120 = vmatpush.msra.mxu0 %v82
    %121 = vmatpush.msra.mxu0 %v80
    %122 = vmatpush.msra.mxu0 %v78
    %123 = vmatpush.msra.mxu0 %v76
    %124 = vmatmul.f32.gmra.mxu0 %v74
    %v125 = vpop.f32.mrf.mxu0
    %v126 = vadd.f32 0.0, %v125
    %127 = vmatmul.f32.gmra.mxu0 %v75
    %v128 = vpop.f32.mrf.mxu0
    %v129 = vadd.f32 0.0, %v128
    %130 = vdwg.mxu0
    %131 = vmatpush.msra.mxu0 %v107
    %132 = vmatpush.msra.mxu0 %v105
    %133 = vmatpush.msra.mxu0 %v103
    %134 = vmatpush.msra.mxu0 %v101
    %135 = vmatpush.msra.mxu0 %v99
    %136 = vmatpush.msra.mxu0 %v97
    %137 = vmatpush.msra.mxu0 %v95
    %138 = vmatpush.msra.mxu0 %v93
    %139 = vmatpush.msra.mxu0 %v91
    %140 = vmatpush.msra.mxu0 %v89
    %141 = vmatpush.msra.mxu0 %v87
    %142 = vmatpush.msra.mxu0 %v85
    %143 = vmatpush.msra.mxu0 %v83
    %144 = vmatpush.msra.mxu0 %v81
    %145 = vmatpush.msra.mxu0 %v79
    %146 = vmatpush.msra.mxu0 %v77
    %147 = vmatmul.f32.gmra.mxu0 %v74
    %v148 = vpop.f32.mrf.mxu0
    %v149 = vadd.f32 0.0, %v148
    %150 = vmatmul.f32.gmra.mxu0 %v75
    %v151 = vpop.f32.mrf.mxu0
    %v152 = vadd.f32 0.0, %v151
    %153 = vdwg.mxu0
    %v154 = vadd.f32 %v70, %v126
    %v155 = vadd.f32 %v71, %v149
    %v156 = vadd.f32 %v72, %v129
    %v157 = vadd.f32 %v73, %v152
    %158 = vst [vmem:[#allocation2] sm:$0xff] %v154
    %159 = vst [vmem:[#allocation2 + $0x8] sm:$0xff] %v155
    %160 = vst [vmem:[#allocation2 + $0x10] sm:$0xff] %v156
    %161 = vst [vmem:[#allocation2 + $0x18] sm:$0xff] %v157
    // Predicated region
    $region30: #{tpu_custom_call.1} parent=1 // pred_check
      %p162 = pneg %p62
    $region31: #{tpu_custom_call.1} parent=1 // pred_check_branch
      %164 = sbr.rel (%p162) target = $region33
    $region32: #{tpu_custom_call.1} parent=1 // pred_region
      %v165 = vld [vmem:[#allocation2] sm:$0xff]
      %v166 = vld [vmem:[#allocation2 + $0x8] sm:$0xff]
      %v167 = vld [vmem:[#allocation2 + $0x10] sm:$0xff]
      %v168 = vld [vmem:[#allocation2 + $0x18] sm:$0xff]
      %v169 = vld [vmem:[#allocation8] sm:$0x3]
      %v171 = vperm.slane %v169, 0
      %v172 = vperm.slane %v169, 1
      %v175 = vadd.f32 %v165, %v171
      %v176 = vadd.f32 %v166, %v172
      %v177 = vadd.f32 %v167, %v171
      %v178 = vadd.f32 %v168, %v172
      %v179 = vmul.f32 %v175, 0.5
      %v180 = vmul.f32 %v176, 0.5
      %v181 = vmul.f32 %v177, 0.5
      %v182 = vmul.f32 %v178, 0.5
      %v183 = vmul.f32 %v175, %v175
      %v184 = vmul.f32 %v176, %v176
      %v185 = vmul.f32 %v177, %v177
      %v186 = vmul.f32 %v178, %v178
      %v187 = vmul.f32 %v183, %v175
      %v188 = vmul.f32 %v184, %v176
      %v189 = vmul.f32 %v185, %v177
      %v190 = vmul.f32 %v186, %v178
      %v191 = vmul.f32 %v187, 0.044715
      %v192 = vmul.f32 %v188, 0.044715
      %v193 = vmul.f32 %v189, 0.044715
      %v194 = vmul.f32 %v190, 0.044715
      %v195 = vadd.f32 %v175, %v191
      %v196 = vadd.f32 %v176, %v192
      %v197 = vadd.f32 %v177, %v193
      %v198 = vadd.f32 %v178, %v194
      %v199 = vmul.f32 %v195, 0.7978846
      %v200 = vmul.f32 %v196, 0.7978846
      %v201 = vmul.f32 %v197, 0.7978846
      %v202 = vmul.f32 %v198, 0.7978846
      %v203 = vtanh.pop %v199
      %v204 = vtanh.pop %v200
      %v205 = vtanh.pop %v201
      %v206 = vtanh.pop %v202
      %v207 = vadd.f32 %v203, 1.0
      %v208 = vadd.f32 %v204, 1.0
      %v209 = vadd.f32 %v205, 1.0
      %v210 = vadd.f32 %v206, 1.0
      %v211 = vmul.f32 %v179, %v207
      %v212 = vmul.f32 %v180, %v208
      %v213 = vmul.f32 %v181, %v209
      %v214 = vmul.f32 %v182, %v210
      %v215 = vlaneseq
      %v216 = vshrl.u32 %v215, 7
      %v217 = vadd.s32 %v216, 8
      %v218 = vstv %s60
      %v219 = vadd.s32 %v216, %v218
      %v220 = vadd.s32 %v217, %v218
      %v221 = vlaneseq
      %v222 = vand.u32 %v221, 127
      %v223 = vadd.s32 %v222, 128
      %v224 = vstv %s61
      %v225 = vadd.s32 %v222, %v224
      %v226 = vadd.s32 %v223, %v224
      %v227 = vmul.u32 %v219, 2654435761
      %v228 = vmul.u32 %v220, 2654435761
      %v229 = vmul.u32 %v225, 2246822519
      %v230 = vmul.u32 %v226, 2246822519
      %v231 = vxor.u32 %v227, %v229
      %v232 = vxor.u32 %v227, %v230
      %v233 = vxor.u32 %v228, %v229
      %v234 = vxor.u32 %v228, %v230
      %v235 = vxor.u32 %v231, 42
      %v236 = vxor.u32 %v232, 42
      %v237 = vxor.u32 %v233, 42
      %v238 = vxor.u32 %v234, 42
      %v239 = vshrl.u32 %v235, 16
      %v240 = vshrl.u32 %v236, 16
      %v241 = vshrl.u32 %v237, 16
      %v242 = vshrl.u32 %v238, 16
      %v243 = vxor.u32 %v235, %v239
      %v244 = vxor.u32 %v236, %v240
      %v245 = vxor.u32 %v237, %v241
      %v246 = vxor.u32 %v238, %v242
      %v247 = vmul.u32 %v243, 2246822507
      %v248 = vmul.u32 %v244, 2246822507
      %v249 = vmul.u32 %v245, 2246822507
      %v250 = vmul.u32 %v246, 2246822507
      %v251 = vshrl.u32 %v247, 13
      %v252 = vshrl.u32 %v248, 13
      %v253 = vshrl.u32 %v249, 13
      %v254 = vshrl.u32 %v250, 13
      %v255 = vxor.u32 %v247, %v251
      %v256 = vxor.u32 %v248, %v252
      %v257 = vxor.u32 %v249, %v253
      %v258 = vxor.u32 %v250, %v254
      %v259 = vmul.u32 %v255, 3266489909
      %v260 = vmul.u32 %v256, 3266489909
      %v261 = vmul.u32 %v257, 3266489909
      %v262 = vmul.u32 %v258, 3266489909
      %v263 = vshrl.u32 %v259, 16
      %v264 = vshrl.u32 %v260, 16
      %v265 = vshrl.u32 %v261, 16
      %v266 = vshrl.u32 %v262, 16
      %v267 = vxor.u32 %v259, %v263
      %v268 = vxor.u32 %v260, %v264
      %v269 = vxor.u32 %v261, %v265
      %v270 = vxor.u32 %v262, %v266
      %v271 = vadd.s32 %v267, 2147483648
      %vm273 = vcmp.ge.s32.totalorder %v271, 2576980377
      %v274 = vadd.s32 %v268, 2147483648
      %vm276 = vcmp.ge.s32.totalorder %v274, 2576980377
      %v277 = vadd.s32 %v269, 2147483648
      %vm279 = vcmp.ge.s32.totalorder %v277, 2576980377
      %v280 = vadd.s32 %v270, 2147483648
      %vm282 = vcmp.ge.s32.totalorder %v280, 2576980377
      %v283 = vmul.f32 %v211, 1.1111112
      %v284 = vmul.f32 %v212, 1.1111112
      %v285 = vmul.f32 %v213, 1.1111112
      %v286 = vmul.f32 %v214, 1.1111112
      %v287 = vsel %vm273, %v283, 0.0
      %v288 = vsel %vm276, %v284, 0.0
      %v289 = vsel %vm279, %v285, 0.0
      %v290 = vsel %vm282, %v286, 0.0
      %291 = vst [vmem:[#allocation9] sm:$0xff] %v287
      %292 = vst [vmem:[#allocation9 + $0x8] sm:$0xff] %v288
      %293 = vst [vmem:[#allocation9 + $0x10] sm:$0xff] %v289
      %294 = vst [vmem:[#allocation9 + $0x18] sm:$0xff] %v290
    $region33: #{tpu_custom_call.1} parent=1 // pred_fallthru
      _
    // Predicated region
    $region34: #{tpu_custom_call.1} parent=1 // pred_check
      _
    $region35: #{tpu_custom_call.1} parent=1 // pred_check_branch
      %296 = sbr.rel (0) target = $region37
    $region36: #{tpu_custom_call.1} parent=1 // pred_region
      %298 = vsyncadd [#allocation5], 0
      %s299 = sshll.u32 [#allocation9], 4
      %s300 = int_to_ptr.vmem [resolvable:$true] %s299
      %s301 = sshll.u32 %s3, 4
      %s302 = int_to_ptr.hbm [resolvable:$true] %s301
      %307 = dma.vmem_to_hbm [thread:$0]  %s300, 512, %s302, [#allocation5], 256, 256, 16
    $region37: #{tpu_custom_call.1} parent=1 // pred_fallthru
      _
    // Predicated region
    $region38: #{tpu_custom_call.1} parent=1 // pred_check
      _
    $region39: #{tpu_custom_call.1} parent=1 // pred_check_branch
      %309 = sbr.rel (0) target = $region41
    $region40: #{tpu_custom_call.1} parent=1 // pred_region
      %311 = dma.done [#allocation5], 512
    $region41: #{tpu_custom_call.1} parent=1 // pred_fallthru
      _
    %312 = vsyncpa [#allocation4], 1
    %313 = vsyncpa [#allocation7], 1
    %314 = vsyncpa [#allocation5], 1

</llo_original>
